<compile_context>
chip_gen: v7x
topology: tpu7x:2x2x1
jax: 0.10.0
libtpu: 0.0.40
codegen_flags: <defaults>
</compile_context>

<pallas_src>
import math

import jax
import jax.numpy as jnp
from jax.experimental import pallas as pl
from jax.experimental.pallas import tpu as pltpu

LN_EPS = 1e-5  # PyTorch nn.LayerNorm default eps


def _merge_kernel(x_ref, we_ref, wo_ref, b_ref, o_ref):
    # x_ref : (th, 2, W2, 2C)  -- th merged rows; dim 1 = spatial-row parity;
    #                             last dim = [col-even C | col-odd C] channels.
    # we_ref: (2C, 2Cout)      -- gamma-folded weight rows for the even-row half.
    # wo_ref: (2C, 2Cout)      -- gamma-folded weight rows for the odd-row half.
    # b_ref : (1, 2Cout)       -- beta @ W
    # o_ref : (th*W2, 2Cout)
    x = x_ref[...].astype(jnp.float32)
    th, _, w2, c2 = x.shape          # c2 == 2*C (static)
    r = th * w2

    xe = x[:, 0].reshape(r, c2)      # [x0 | x2] channels per merged token
    xo = x[:, 1].reshape(r, c2)      # [x1 | x3] channels per merged token

    inv_4c = 1.0 / (2.0 * c2)        # 1 / (4C)
    mean = (jnp.sum(xe, axis=-1, keepdims=True)
            + jnp.sum(xo, axis=-1, keepdims=True)) * inv_4c
    ce = xe - mean
    co = xo - mean
    var = (jnp.sum(ce * ce, axis=-1, keepdims=True)
           + jnp.sum(co * co, axis=-1, keepdims=True)) * inv_4c
    inv = jax.lax.rsqrt(var + LN_EPS)

    mxu_dt = we_ref.dtype            # feed MXU native (bf16) operands if weights are bf16
    ne = (ce * inv).astype(mxu_dt)
    no = (co * inv).astype(mxu_dt)
    y = (jnp.dot(ne, we_ref[...], preferred_element_type=jnp.float32)
         + jnp.dot(no, wo_ref[...], preferred_element_type=jnp.float32)
         + b_ref[...].astype(jnp.float32))
    o_ref[...] = y.astype(o_ref.dtype)


def _pick_tile(h2, w2, c, itemsize, batch):
    """Largest divisor of h2 whose block stays within ~8 MiB of activations."""
    target_rows = max(w2, (8 << 20) // max(1, 4 * c * itemsize))
    best = 1
    for cand in range(1, h2 + 1):
        if h2 % cand == 0 and cand * w2 <= target_rows:
            best = cand
    # Keep at least 2 grid steps so "parallel" axes can shard across v7x's 2 TCs.
    if batch * (h2 // best) < 2:
        for cand in range(best - 1, 0, -1):
            if h2 % cand == 0:
                best = cand
                break
    return best


def patch_merge_block(x, gamma, beta, w):
    """Pallas equivalent of PatchMergeBlock.forward.

    x:     [B, N, C]  (N = hw*hw)
    gamma: [4C], beta: [4C]   LayerNorm affine (PyTorch channel order)
    w:     [4C, 2C]           == PyTorch reduction.weight.T (PyTorch channel order)
    returns [B, (hw_pad//2)**2, 2C]
    """
    B, N, C = x.shape
    hw = math.isqrt(N)
    assert hw * hw == N, (hw, N)

    xr = x.reshape(B, hw, hw, C)
    if hw % 2 == 1:
        xr = jnp.pad(xr, ((0, 0), (0, 1), (0, 1), (0, 0)))
        hw += 1
    h2 = w2 = hw // 2

    # ---- fold LayerNorm affine into the reduction weight (one-time, tiny) ----
    wf = gamma.astype(jnp.float32)[:, None] * w.astype(jnp.float32)     # [4C, 2C]
    bias = (beta.astype(jnp.float32) @ w.astype(jnp.float32)).reshape(1, 2 * C)
    # Permute/split rows to the kernel's memory order:
    #   even spatial row carries [x0 | x2]; odd spatial row carries [x1 | x3].
    w_e = jnp.concatenate([wf[0 * C:1 * C], wf[2 * C:3 * C]], axis=0).astype(w.dtype)
    w_o = jnp.concatenate([wf[1 * C:2 * C], wf[3 * C:4 * C]], axis=0).astype(w.dtype)

    # Free contiguous reshape: (B, hw, hw, C) -> (B, H2, 2, W2, 2C).
    xv = xr.reshape(B, h2, 2, w2, 2 * C)

    itemsize = jnp.dtype(x.dtype).itemsize
    th = _pick_tile(h2, w2, C, itemsize, B)
    steps_i = h2 // th
    r = th * w2
    m = B * h2 * w2

    # VMEM budget: double-buffered x/out blocks + weights + f32 temporaries.
    bytes_x = r * 4 * C * itemsize
    bytes_o = r * 2 * C * itemsize
    bytes_w = 2 * (2 * C) * (2 * C) * jnp.dtype(w.dtype).itemsize
    bytes_tmp = 6 * r * 2 * C * 4
    vmem_limit = int(1.5 * (2 * bytes_x + 2 * bytes_o + 2 * bytes_w + bytes_tmp)) + (4 << 20)
    vmem_limit = max(32 << 20, min(vmem_limit, 100 << 20))

    out2d = pl.pallas_call(
        _merge_kernel,
        out_shape=jax.ShapeDtypeStruct((m, 2 * C), x.dtype),
        grid_spec=pltpu.PrefetchScalarGridSpec(
            num_scalar_prefetch=0,
            grid=(B, steps_i),
            in_specs=[
                # activations: batch squeezed, th merged rows per step, both
                # row parities / all merged cols / all 2C channels in-block.
                pl.BlockSpec((None, th, 2, w2, 2 * C),
                             lambda b, i: (b, i, 0, 0, 0)),
                pl.BlockSpec((2 * C, 2 * C), lambda b, i: (0, 0)),   # w_e (resident)
                pl.BlockSpec((2 * C, 2 * C), lambda b, i: (0, 0)),   # w_o (resident)
                pl.BlockSpec((1, 2 * C), lambda b, i: (0, 0)),       # bias (resident)
            ],
            out_specs=pl.BlockSpec((r, 2 * C),
                                   lambda b, i: (b * steps_i + i, 0)),
        ),
        compiler_params=pltpu.CompilerParams(
            dimension_semantics=("parallel", "parallel"),
            vmem_limit_bytes=vmem_limit),
    )(xv, w_e, w_o, bias)

    return out2d.reshape(B, h2 * w2, 2 * C)


def _reference(x, gamma, beta, w):
    """Pure-JAX reference matching the PyTorch forward semantics."""
    B, N, C = x.shape
    hw = math.isqrt(N)
    xr = x.reshape(B, hw, hw, C)
    if hw % 2 == 1:
        xr = jnp.pad(xr, ((0, 0), (0, 1), (0, 1), (0, 0)))
        hw += 1
    x0 = xr[:, 0::2, 0::2, :]
    x1 = xr[:, 1::2, 0::2, :]
    x2 = xr[:, 0::2, 1::2, :]
    x3 = xr[:, 1::2, 1::2, :]
    xm = jnp.concatenate([x0, x1, x2, x3], axis=-1).reshape(B, hw * hw // 4, 4 * C)
    mean = jnp.mean(xm, axis=-1, keepdims=True)
    var = jnp.mean((xm - mean) ** 2, axis=-1, keepdims=True)
    xn = (xm - mean) / jnp.sqrt(var + LN_EPS) * gamma + beta
    return jnp.einsum("bnk,kd->bnd", xn, w)


if __name__ == "__main__":
    # Small shapes: C = 32 -> 4C = 128 (lane-aligned input halves), 2C = 64.
    B, hw, C = 2, 16, 32
    N = hw * hw

    key = jax.random.PRNGKey(0)
    kx, kg, kb, kw = jax.random.split(key, 4)
    x = jax.random.normal(kx, (B, N, C), dtype=jnp.float32)
    gamma = 1.0 + 0.1 * jax.random.normal(kg, (4 * C,), dtype=jnp.float32)
    beta = 0.1 * jax.random.normal(kb, (4 * C,), dtype=jnp.float32)
    # PyTorch reduction weight is [2C, 4C]; kernel takes W = weight.T = [4C, 2C].
    w = (jax.random.normal(kw, (4 * C, 2 * C), dtype=jnp.float32)
         / jnp.sqrt(4.0 * C))

    out = patch_merge_block(x, gamma, beta, w)
    out = jax.block_until_ready(out)

    ref = _reference(x, gamma, beta, w)
    assert out.shape == (B, N // 4, 2 * C), out.shape
    err = float(jnp.max(jnp.abs(out - ref)))
    assert jnp.allclose(out, ref, atol=2e-4, rtol=2e-4), err

    print("KERNEL_OK")
</pallas_src>

<mosaic_0001>
module attributes {stable_mosaic.version = 11 : i64} {
  func.func @_merge_kernel(%arg0: i32, %arg1: i32, %arg2: memref<1x8x2x8x64xf32, #tpu.memory_space<vmem>>, %arg3: memref<64x64xf32, #tpu.memory_space<vmem>>, %arg4: memref<64x64xf32, #tpu.memory_space<vmem>>, %arg5: memref<1x64xf32, #tpu.memory_space<vmem>>, %arg6: memref<64x64xf32, #tpu.memory_space<vmem>>) attributes {dimension_semantics = [#tpu.dimension_semantics<parallel>, #tpu.dimension_semantics<parallel>], iteration_bounds = array<i64: 2, 1>, scalar_prefetch = 0 : i64, scratch_operands = 0 : i64, tpu.core_type = #tpu.core_type<tc>, window_params = [{transform_indices = @transform_0, window_bounds = array<i64: 1, 8, 2, 8, 64>}, {pipeline_mode = #tpu.pipeline_mode<synchronous>, transform_indices = @transform_1, window_bounds = array<i64: 64, 64>}, {pipeline_mode = #tpu.pipeline_mode<synchronous>, transform_indices = @transform_2, window_bounds = array<i64: 64, 64>}, {pipeline_mode = #tpu.pipeline_mode<synchronous>, transform_indices = @transform_3, window_bounds = array<i64: 1, 64>}, {transform_indices = @transform_4, window_bounds = array<i64: 64, 64>}]} {
    %c0 = arith.constant 0 : index
    %c0_0 = arith.constant 0 : index
    %c0_1 = arith.constant 0 : index
    %c0_2 = arith.constant 0 : index
    %c0_3 = arith.constant 0 : index
    %0 = vector.load %arg2[%c0, %c0_0, %c0_1, %c0_2, %c0_3] : memref<1x8x2x8x64xf32, #tpu.memory_space<vmem>>, vector<1x8x2x8x64xf32>
    %1 = vector.shape_cast %0 : vector<1x8x2x8x64xf32> to vector<8x2x8x64xf32>
    %2 = vector.extract_strided_slice %1 {offsets = [0, 0, 0, 0], sizes = [8, 1, 8, 64], strides = [1, 1, 1, 1]} : vector<8x2x8x64xf32> to vector<8x1x8x64xf32>
    %3 = vector.shape_cast %2 : vector<8x1x8x64xf32> to vector<8x8x64xf32>
    %4 = vector.shape_cast %3 : vector<8x8x64xf32> to vector<64x64xf32>
    %5 = vector.extract_strided_slice %1 {offsets = [0, 1, 0, 0], sizes = [8, 1, 8, 64], strides = [1, 1, 1, 1]} : vector<8x2x8x64xf32> to vector<8x1x8x64xf32>
    %6 = vector.shape_cast %5 : vector<8x1x8x64xf32> to vector<8x8x64xf32>
    %7 = vector.shape_cast %6 : vector<8x8x64xf32> to vector<64x64xf32>
    %cst = arith.constant dense<0.000000e+00> : vector<64xf32>
    %8 = vector.multi_reduction <add>, %4, %cst [1] : vector<64x64xf32> to vector<64xf32>
    %9 = vector.shape_cast %8 : vector<64xf32> to vector<64x1xf32>
    %cst_4 = arith.constant dense<0.000000e+00> : vector<64xf32>
    %10 = vector.multi_reduction <add>, %7, %cst_4 [1] : vector<64x64xf32> to vector<64xf32>
    %11 = vector.shape_cast %10 : vector<64xf32> to vector<64x1xf32>
    %12 = arith.addf %9, %11 : vector<64x1xf32>
    %cst_5 = arith.constant 7.812500e-03 : f32
    %13 = vector.broadcast %cst_5 : f32 to vector<64x1xf32>
    %14 = arith.mulf %12, %13 : vector<64x1xf32>
    %15 = vector.broadcast %14 : vector<64x1xf32> to vector<64x64xf32>
    %16 = arith.subf %4, %15 : vector<64x64xf32>
    %17 = vector.broadcast %14 : vector<64x1xf32> to vector<64x64xf32>
    %18 = arith.subf %7, %17 : vector<64x64xf32>
    %19 = arith.mulf %16, %16 : vector<64x64xf32>
    %cst_6 = arith.constant dense<0.000000e+00> : vector<64xf32>
    %20 = vector.multi_reduction <add>, %19, %cst_6 [1] : vector<64x64xf32> to vector<64xf32>
    %21 = vector.shape_cast %20 : vector<64xf32> to vector<64x1xf32>
    %22 = arith.mulf %18, %18 : vector<64x64xf32>
    %cst_7 = arith.constant dense<0.000000e+00> : vector<64xf32>
    %23 = vector.multi_reduction <add>, %22, %cst_7 [1] : vector<64x64xf32> to vector<64xf32>
    %24 = vector.shape_cast %23 : vector<64xf32> to vector<64x1xf32>
    %25 = arith.addf %21, %24 : vector<64x1xf32>
    %cst_8 = arith.constant 7.812500e-03 : f32
    %26 = vector.broadcast %cst_8 : f32 to vector<64x1xf32>
    %27 = arith.mulf %25, %26 : vector<64x1xf32>
    %cst_9 = arith.constant 9.99999974E-6 : f32
    %28 = vector.broadcast %cst_9 : f32 to vector<64x1xf32>
    %29 = arith.addf %27, %28 : vector<64x1xf32>
    %30 = math.rsqrt %29 : vector<64x1xf32>
    %31 = vector.broadcast %30 : vector<64x1xf32> to vector<64x64xf32>
    %32 = arith.mulf %16, %31 : vector<64x64xf32>
    %33 = vector.broadcast %30 : vector<64x1xf32> to vector<64x64xf32>
    %34 = arith.mulf %18, %33 : vector<64x64xf32>
    %c0_10 = arith.constant 0 : index
    %c0_11 = arith.constant 0 : index
    %35 = vector.load %arg3[%c0_10, %c0_11] : memref<64x64xf32, #tpu.memory_space<vmem>>, vector<64x64xf32>
    %cst_12 = arith.constant dense<0.000000e+00> : vector<64x64xf32>
    %36 = tpu.matmul %32, %35, %cst_12 {dimension_numbers = #tpu.dot_dimension_numbers<[1], [0], [0], [1], [0, 0, 1, 1], [], []>} : vector<64x64xf32>, vector<64x64xf32>, vector<64x64xf32> -> vector<64x64xf32>
    %c0_13 = arith.constant 0 : index
    %c0_14 = arith.constant 0 : index
    %37 = vector.load %arg4[%c0_13, %c0_14] : memref<64x64xf32, #tpu.memory_space<vmem>>, vector<64x64xf32>
    %cst_15 = arith.constant dense<0.000000e+00> : vector<64x64xf32>
    %38 = tpu.matmul %34, %37, %cst_15 {dimension_numbers = #tpu.dot_dimension_numbers<[1], [0], [0], [1], [0, 0, 1, 1], [], []>} : vector<64x64xf32>, vector<64x64xf32>, vector<64x64xf32> -> vector<64x64xf32>
    %39 = arith.addf %36, %38 : vector<64x64xf32>
    %c0_16 = arith.constant 0 : index
    %c0_17 = arith.constant 0 : index
    %40 = vector.load %arg5[%c0_16, %c0_17] : memref<1x64xf32, #tpu.memory_space<vmem>>, vector<1x64xf32>
    %41 = vector.broadcast %40 : vector<1x64xf32> to vector<64x64xf32>
    %42 = arith.addf %39, %41 : vector<64x64xf32>
    %c0_18 = arith.constant 0 : index
    %c0_19 = arith.constant 0 : index
    %43 = vector.load %arg6[%c0_18, %c0_19] : memref<64x64xf32, #tpu.memory_space<vmem>>, vector<64x64xf32>
    tpu.vector_store %arg6[%c0_18, %c0_19], %42 {strides = array<i32>} : memref<64x64xf32, #tpu.memory_space<vmem>>, vector<64x64xf32>,
    return
  }
  func.func @transform_0(%arg0: i32, %arg1: i32) -> (i32, i32, i32, i32, i32) {
    %c0_i32 = arith.constant 0 : i32
    %c0_i32_0 = arith.constant 0 : i32
    %c0_i32_1 = arith.constant 0 : i32
    %c0_i32_2 = arith.constant 0 : i32
    return %arg0, %arg1, %c0_i32, %c0_i32_0, %c0_i32_1 : i32, i32, i32, i32, i32
  }
  func.func @transform_1(%arg0: i32, %arg1: i32) -> (i32, i32) {
    %c0_i32 = arith.constant 0 : i32
    %c0_i32_0 = arith.constant 0 : i32
    %c0_i32_1 = arith.constant 0 : i32
    return %c0_i32, %c0_i32_0 : i32, i32
  }
  func.func @transform_2(%arg0: i32, %arg1: i32) -> (i32, i32) {
    %c0_i32 = arith.constant 0 : i32
    %c0_i32_0 = arith.constant 0 : i32
    %c0_i32_1 = arith.constant 0 : i32
    return %c0_i32, %c0_i32_0 : i32, i32
  }
  func.func @transform_3(%arg0: i32, %arg1: i32) -> (i32, i32) {
    %c0_i32 = arith.constant 0 : i32
    %c0_i32_0 = arith.constant 0 : i32
    %c0_i32_1 = arith.constant 0 : i32
    return %c0_i32, %c0_i32_0 : i32, i32
  }
  func.func @transform_4(%arg0: i32, %arg1: i32) -> (i32, i32) {
    %c1_i32 = arith.constant 1 : i32
    %0 = arith.muli %arg0, %c1_i32 : i32
    %1 = arith.addi %0, %arg1 : i32
    %c0_i32 = arith.constant 0 : i32
    %c0_i32_0 = arith.constant 0 : i32
    return %1, %c0_i32 : i32, i32
  }
}

</mosaic_0001>

<llo_original>
// kernel: tpu_custom_call.1
$region0: #{tpu_custom_call.1}
  #allocation0 [shape = 'u32[]', space=smem, size = 0x4, offset = 0x4, fixed_abs, tag = 'smem constant byte address 0x4 - core index']
  #allocation1 [shape = 'u32[144,128]{1,0:T(1,128)}', space=vmem, size = 0x12000, scoped, tag = 'internal scratch']
  %s0 = inlined_call_operand.hbm [shape: f32[2,8,2,8,64], index: 0, kind: input, shape index: {}]
  %s1 = inlined_call_operand.hbm [shape: f32[64,64], index: 1, kind: input, shape index: {}]
  %s2 = inlined_call_operand.hbm [shape: f32[64,64], index: 2, kind: input, shape index: {}]
  %s3 = inlined_call_operand.vmem [shape: f32[1,64], index: 3, kind: input, shape index: {}]
  %s4 = inlined_call_operand.vmem [shape: f32[128,64], index: 4, kind: output, shape index: {}]
  %s5 = sld [smem:[#allocation0]]
  $region61: #{tpu_custom_call.1} parent=0
    _
  %s7 = ssub.s32 1, %s5
  %s8 = scalar_select 0, %s7, %s5
  $region1: #{tpu_custom_call.1} parent=0
    #allocation2 [shape = 'u8[131072]{0}', space=vmem, size = 0x20000, scoped, tag = 'input window, operand 0']
    #allocation3 [shape = 's32[2]{0}', space=sflag, size = 0x8, scoped, tag = 'scoped memory for tpu_custom_call.1']
    #allocation4 [shape = 'u8[32768]{0}', space=vmem, size = 0x8000, scoped, tag = 'input window, operand 1, single buffered']
    #allocation5 [shape = 's32[1]{0}', space=sflag, size = 0x4, scoped, tag = 'scoped memory for tpu_custom_call.1']
    #allocation6 [shape = 'u8[32768]{0}', space=vmem, size = 0x8000, scoped, tag = 'input window, operand 2, single buffered']
    %9 = vsyncpa [#allocation3], 0
    %s10 = scalar_lea.sflag [#allocation3], 1
    %11 = vsyncpa %s10, 0
    %12 = vsyncpa [#allocation5], 0
    loop: start=0, step=1, limit=4
    $region2: #{tpu_custom_call.1} parent=1 // loop_pre_header
      _
    $region3: #{tpu_custom_call.1} parent=1 // loop_header
      %s14 = sphi 0, %s18
      %p15 = scmp.ge.s32.totalorder %s14, 4
      %s21 = sphi 0, %s33
      %s22 = sphi 0, %s29
      %s23 = sphi 0, %s21
      %s24 = sphi 0, %s22
      %s25 = sphi 0, %s23
      %s26 = sphi 0, %s24
      %s38 = sphi 0, %s40
      %s41 = sphi 0, %s38
      %s42 = sphi 0, %s41
      %s58 = sphi 0, %s42
      %s62 = sphi 0, %s62
      %s64 = sphi 0, %s62
      %s65 = sphi 0, %s64
      %s79 = sphi 0, %s65
      %s83 = sphi 0, %s83
      %s85 = sphi 0, %s83
      %s86 = sphi 0, %s85
      %s100 = sphi 0, %s86
      %s104 = sphi 0, %s104
      %s106 = sphi 0, %s104
      %s107 = sphi 0, %s106
      %s121 = sphi 0, %s107
      %s129 = sphi 0, %s131
      %s132 = sphi 0, %s129
      %s133 = sphi 0, %s132
      %s149 = sphi 0, %s133
    $region4: #{tpu_custom_call.1} parent=1 // loop_header_branch
      %17 = sbr.rel (%p15) target = $region8
    $region5: #{tpu_custom_call.1} parent=1 // loop_body
      %s19 = ssub.s32 %s14, 1
      %s20 = ssub.s32 %s14, 2
      %s27 = sadd.s32 1, %s22
      %p28 = scmp.ge.s32.totalorder %s27, 1
      %s29 = scalar_select %p28, 0, %s27
      %s30 = sadd.s32 1, %s21
      %s31 = scalar_select %p28, %s30, %s21
      %p32 = scmp.ge.s32.totalorder %s31, 2
      %s33 = scalar_select %p32, 0, %s31
      %s34 = ssub.s32 %s21, %s33
      %s35 = ssub.s32 %s22, %s29
      %s36 = sor.u32 %s34, %s35
      %p37 = scmp.eq.s32.totalorder %s36, 0
      %s39 = sadd.s32 %s38, 1
      %s40 = scalar_select %p37, %s38, %s39
      %p43 = pneg %p37
      %p44 = scmp.eq.s32.totalorder %s14, 1
      %p45 = por %p43, %p44
      %p46 = scmp.ne.s32.totalorder %s38, %s41
      %p47 = scmp.eq.s32.totalorder %s14, 0
      %p48 = por %p46, %p47
      %p49 = scmp.ne.s32.totalorder %s38, %s41
      %p50 = scmp.eq.s32.totalorder %s19, 1
      %p51 = por %p49, %p50
      %p52 = scmp.ne.s32.totalorder %s41, %s42
      %p53 = scmp.eq.s32.totalorder %s19, 0
      %p54 = por %p52, %p53
      %p55 = scmp.ne.s32.totalorder %s41, %s42
      %p56 = scmp.eq.s32.totalorder %s20, 1
      %p57 = por %p55, %p56
      %p59 = scmp.ne.s32.totalorder %s42, %s58
      %p60 = scmp.eq.s32.totalorder %s20, 0
      %p61 = por %p59, %p60
      %s63 = sadd.s32 %s62, 1
      %p66 = scmp.eq.s32.totalorder %s14, 1
      %p67 = scmp.ne.s32.totalorder %s62, %s64
      %p68 = scmp.eq.s32.totalorder %s14, 0
      %p69 = por %p67, %p68
      %p70 = scmp.ne.s32.totalorder %s62, %s64
      %p71 = scmp.eq.s32.totalorder %s19, 1
      %p72 = por %p70, %p71
      %p73 = scmp.ne.s32.totalorder %s64, %s65
      %p74 = scmp.eq.s32.totalorder %s19, 0
      %p75 = por %p73, %p74
      %p76 = scmp.ne.s32.totalorder %s64, %s65
      %p77 = scmp.eq.s32.totalorder %s20, 1
      %p78 = por %p76, %p77
      %p80 = scmp.ne.s32.totalorder %s65, %s79
      %p81 = scmp.eq.s32.totalorder %s20, 0
      %p82 = por %p80, %p81
      %s84 = sadd.s32 %s83, 1
      %p87 = scmp.eq.s32.totalorder %s14, 1
      %p88 = scmp.ne.s32.totalorder %s83, %s85
      %p89 = scmp.eq.s32.totalorder %s14, 0
      %p90 = por %p88, %p89
      %p91 = scmp.ne.s32.totalorder %s83, %s85
      %p92 = scmp.eq.s32.totalorder %s19, 1
      %p93 = por %p91, %p92
      %p94 = scmp.ne.s32.totalorder %s85, %s86
      %p95 = scmp.eq.s32.totalorder %s19, 0
      %p96 = por %p94, %p95
      %p97 = scmp.ne.s32.totalorder %s85, %s86
      %p98 = scmp.eq.s32.totalorder %s20, 1
      %p99 = por %p97, %p98
      %p101 = scmp.ne.s32.totalorder %s86, %s100
      %p102 = scmp.eq.s32.totalorder %s20, 0
      %p103 = por %p101, %p102
      %s105 = sadd.s32 %s104, 1
      %p108 = scmp.eq.s32.totalorder %s14, 1
      %p109 = scmp.ne.s32.totalorder %s104, %s106
      %p110 = scmp.eq.s32.totalorder %s14, 0
      %p111 = por %p109, %p110
      %p112 = scmp.ne.s32.totalorder %s104, %s106
      %p113 = scmp.eq.s32.totalorder %s19, 1
      %p114 = por %p112, %p113
      %p115 = scmp.ne.s32.totalorder %s106, %s107
      %p116 = scmp.eq.s32.totalorder %s19, 0
      %p117 = por %p115, %p116
      %p118 = scmp.ne.s32.totalorder %s106, %s107
      %p119 = scmp.eq.s32.totalorder %s20, 1
      %p120 = por %p118, %p119
      %p122 = scmp.ne.s32.totalorder %s107, %s121
      %p123 = scmp.eq.s32.totalorder %s20, 0
      %p124 = por %p122, %p123
      %s125 = sadd.s32 %s21, %s22
      %s126 = sadd.s32 %s33, %s29
      %s127 = ssub.s32 %s125, %s126
      %p128 = scmp.eq.s32.totalorder %s127, 0
      %s130 = sadd.s32 %s129, 1
      %s131 = scalar_select %p128, %s129, %s130
      %p134 = pneg %p128
      %p135 = scmp.eq.s32.totalorder %s14, 1
      %p136 = por %p134, %p135
      %p137 = scmp.ne.s32.totalorder %s129, %s132
      %p138 = scmp.eq.s32.totalorder %s14, 0
      %p139 = por %p137, %p138
      %p140 = scmp.ne.s32.totalorder %s129, %s132
      %p141 = scmp.eq.s32.totalorder %s19, 1
      %p142 = por %p140, %p141
      %p143 = scmp.ne.s32.totalorder %s132, %s133
      %p144 = scmp.eq.s32.totalorder %s19, 0
      %p145 = por %p143, %p144
      %p146 = scmp.ne.s32.totalorder %s132, %s133
      %p147 = scmp.eq.s32.totalorder %s20, 1
      %p148 = por %p146, %p147
      %p150 = scmp.ne.s32.totalorder %s133, %s149
      %p151 = scmp.eq.s32.totalorder %s20, 0
      %p152 = por %p150, %p151
      %p153 = scmp.le.s32.totalorder 1, %s14
      %p154 = scmp.lt.s32.totalorder %s14, 3
      %p155 = pnand %p153, %p154
      %p156 = pneg %p155
      // Predicated region
      $region9: #{tpu_custom_call.1} parent=5 // pred_check
        _
      $region10: #{tpu_custom_call.1} parent=5 // pred_check_branch
        %158 = sbr.rel (%p155) target = $region12
      $region11: #{tpu_custom_call.1} parent=5 // pred_region
        %s159 = ssub.s32 %s14, 1
        // Predicated region
        $region13: #{tpu_custom_call.1} parent=11 // pred_check
          %p160 = pneg %p75
        $region14: #{tpu_custom_call.1} parent=11 // pred_check_branch
          %162 = sbr.rel (%p160) target = $region16
        $region15: #{tpu_custom_call.1} parent=11 // pred_region
          %s164 = ssub.s32 1024, 1024
          %165 = vsyncadd [#allocation5], %s164
          %s166 = sshll.u32 [#allocation4], 4
          %s167 = int_to_ptr.vmem [resolvable:$true] %s166
          %172 = dma.hbm_to_vmem [thread:$0]  %s1, 1024, %s167, [#allocation5], 128, 128, 8
        $region16: #{tpu_custom_call.1} parent=11 // pred_fallthru
          _
        // Predicated region
        $region17: #{tpu_custom_call.1} parent=11 // pred_check
          %p173 = pneg %p96
        $region18: #{tpu_custom_call.1} parent=11 // pred_check_branch
          %175 = sbr.rel (%p173) target = $region20
        $region19: #{tpu_custom_call.1} parent=11 // pred_region
          %s177 = ssub.s32 1024, 1024
          %178 = vsyncadd [#allocation5], %s177
          %s179 = sshll.u32 [#allocation6], 4
          %s180 = int_to_ptr.vmem [resolvable:$true] %s179
          %185 = dma.hbm_to_vmem [thread:$0]  %s2, 1024, %s180, [#allocation5], 128, 128, 8
        $region20: #{tpu_custom_call.1} parent=11 // pred_fallthru
          _
        // Predicated region
        $region21: #{tpu_custom_call.1} parent=11 // pred_check
          %p186 = pneg %p117
        $region22: #{tpu_custom_call.1} parent=11 // pred_check_branch
          %188 = sbr.rel (%p186) target = $region24
        $region23: #{tpu_custom_call.1} parent=11 // pred_region
          _
        $region24: #{tpu_custom_call.1} parent=11 // pred_fallthru
          _
      $region12: #{tpu_custom_call.1} parent=5 // pred_fallthru
        _
      %p189 = scmp.lt.s32.totalorder %s14, 2
      // Predicated region
      $region25: #{tpu_custom_call.1} parent=5 // pred_check
        %p190 = pneg %p189
      $region26: #{tpu_custom_call.1} parent=5 // pred_check_branch
        %192 = sbr.rel (%p190) target = $region28
      $region27: #{tpu_custom_call.1} parent=5 // pred_region
        // Predicated region
        $region29: #{tpu_custom_call.1} parent=27 // pred_check
          %p193 = pneg %p48
        $region30: #{tpu_custom_call.1} parent=27 // pred_check_branch
          %195 = sbr.rel (%p193) target = $region32
        $region31: #{tpu_custom_call.1} parent=27 // pred_region
          %s196 = sand.u32 %s38, 1
          %s197 = scalar_lea.sflag [#allocation3], %s196
          %s198 = sand.u32 %s38, 1
          %s199 = smul.addr %s198, 128
          %s200 = scalar_lea.vmem [#allocation2], %s199
          %s201 = smul.u32 8, %s22
          %s203 = ssub.s32 2048, 2048
          %204 = vsyncadd %s197, %s203
          %s205 = smul.addr %s201, 2
          %s206 = smul.addr %s21, 16
          %s207 = sadd.s32 %s205, %s206
          %s208 = smul.addr %s207, 128
          %s209 = scalar_lea.hbm %s0, %s208
          %s210 = sshll.u32 %s200, 4
          %s211 = int_to_ptr.vmem [resolvable:$true] %s210
          %216 = dma.hbm_to_vmem [thread:$0]  %s209, 2048, %s211, %s197, 128, 128, 8
        $region32: #{tpu_custom_call.1} parent=27 // pred_fallthru
          _
      $region28: #{tpu_custom_call.1} parent=5 // pred_fallthru
        _
      %p217 = scmp.le.s32.totalorder 1, %s14
      %p218 = scmp.lt.s32.totalorder %s14, 3
      %p219 = pnand %p217, %p218
      %p220 = pneg %p219
      // Predicated region
      $region33: #{tpu_custom_call.1} parent=5 // pred_check
        _
      $region34: #{tpu_custom_call.1} parent=5 // pred_check_branch
        %222 = sbr.rel (%p219) target = $region36
      $region35: #{tpu_custom_call.1} parent=5 // pred_region
        %s223 = ssub.s32 %s14, 1
        %s224 = sand.u32 %s41, 1
        %s225 = scalar_lea.sflag [#allocation3], %s224
        %s226 = sand.u32 %s41, 1
        %s227 = smul.addr %s226, 128
        %s228 = scalar_lea.vmem [#allocation2], %s227
        // Predicated region
        $region37: #{tpu_custom_call.1} parent=35 // pred_check
          %p229 = pneg %p54
        $region38: #{tpu_custom_call.1} parent=35 // pred_check_branch
          %231 = sbr.rel (%p229) target = $region40
        $region39: #{tpu_custom_call.1} parent=35 // pred_region
          %232 = dma.done %s225, 2048
        $region40: #{tpu_custom_call.1} parent=35 // pred_fallthru
          _
        // Predicated region
        $region41: #{tpu_custom_call.1} parent=35 // pred_check
          %p233 = pneg %p75
        $region42: #{tpu_custom_call.1} parent=35 // pred_check_branch
          %235 = sbr.rel (%p233) target = $region44
        $region43: #{tpu_custom_call.1} parent=35 // pred_region
          %236 = dma.done [#allocation5], 1024
        $region44: #{tpu_custom_call.1} parent=35 // pred_fallthru
          _
        // Predicated region
        $region45: #{tpu_custom_call.1} parent=35 // pred_check
          %p237 = pneg %p96
        $region46: #{tpu_custom_call.1} parent=35 // pred_check_branch
          %239 = sbr.rel (%p237) target = $region48
        $region47: #{tpu_custom_call.1} parent=35 // pred_region
          %240 = dma.done [#allocation5], 1024
        $region48: #{tpu_custom_call.1} parent=35 // pred_fallthru
          _
        %s241 = sand.u32 %s41, 1
        %s242 = scalar_lea.sflag [#allocation3], %s241
        %s243 = sand.u32 %s41, 1
        %s244 = smul.addr %s243, 128
        %s245 = scalar_lea.vmem [#allocation2], %s244
        %p246 = pneg %p54
        %p247 = pneg %p51
        %p248 = pneg %p75
        %p249 = pneg %p72
        %p250 = pneg %p96
        %p251 = pneg %p93
        %p252 = pneg %p117
        %p253 = pneg %p114
        %p254 = pneg %p145
        %p255 = pneg %p142
        %s256 = sadd.s32 %s23, %s24
        %s257 = smul.u32 8, %s256
        %p258 = scmp.lt.s32.totalorder %s257, 15
        %s259 = scalar_select %p258, %s257, 15
        %s260 = smul.addr %s259, 8
        %s261 = scalar_lea.vmem %s4, %s260
        %s262 = smul.u32 8, %s24
        %s263 = sadd.s32 %s23, %s24
        %s264 = smul.u32 8, %s263
        %p265 = scmp.lt.s32.totalorder %s264, 15
        %s266 = scalar_select %p265, %s264, 15
        %s267 = smul.addr %s266, 8
        %s268 = scalar_lea.vmem %s4, %s267
        %s269 = sadd.s32 %s23, %s24
        %s270 = smul.u32 8, %s269
        %v271 = vld [vmem:[%s228] sm:$0xff]
        %v272 = vld [vmem:[%s228 + $0x8] sm:$0xff]
        %v273 = vld [vmem:[%s228 + $0x10] sm:$0xff]
        %v274 = vld [vmem:[%s228 + $0x18] sm:$0xff]
        %v275 = vld [vmem:[%s228 + $0x20] sm:$0xff]
        %v276 = vld [vmem:[%s228 + $0x28] sm:$0xff]
        %v277 = vld [vmem:[%s228 + $0x30] sm:$0xff]
        %v278 = vld [vmem:[%s228 + $0x38] sm:$0xff]
        %v279 = vld [vmem:[%s228 + $0x40] sm:$0xff]
        %v280 = vld [vmem:[%s228 + $0x48] sm:$0xff]
        %v281 = vld [vmem:[%s228 + $0x50] sm:$0xff]
        %v282 = vld [vmem:[%s228 + $0x58] sm:$0xff]
        %v283 = vld [vmem:[%s228 + $0x60] sm:$0xff]
        %v284 = vld [vmem:[%s228 + $0x68] sm:$0xff]
        %v285 = vld [vmem:[%s228 + $0x70] sm:$0xff]
        %v286 = vld [vmem:[%s228 + $0x78] sm:$0xff]
        %vm287 = vcmask 523264
        %v288 = vsel %vm287, %v271, 0.0
        %289 = vadd.xlane.f32.xlu0 %v288
        %v290 = vpop.xlane.xlu0 %289
        %v291 = vsel %vm287, %v273, 0.0
        %292 = vadd.xlane.f32.xlu0 %v291
        %v293 = vpop.xlane.xlu0 %292
        %v294 = vsel %vm287, %v275, 0.0
        %295 = vadd.xlane.f32.xlu0 %v294
        %v296 = vpop.xlane.xlu0 %295
        %v297 = vsel %vm287, %v277, 0.0
        %298 = vadd.xlane.f32.xlu0 %v297
        %v299 = vpop.xlane.xlu0 %298
        %v300 = vsel %vm287, %v279, 0.0
        %301 = vadd.xlane.f32.xlu0 %v300
        %v302 = vpop.xlane.xlu0 %301
        %v303 = vsel %vm287, %v281, 0.0
        %304 = vadd.xlane.f32.xlu0 %v303
        %v305 = vpop.xlane.xlu0 %304
        %v306 = vsel %vm287, %v283, 0.0
        %307 = vadd.xlane.f32.xlu0 %v306
        %v308 = vpop.xlane.xlu0 %307
        %v309 = vsel %vm287, %v285, 0.0
        %310 = vadd.xlane.f32.xlu0 %v309
        %v311 = vpop.xlane.xlu0 %310
        %v312 = vsel %vm287, %v272, 0.0
        %313 = vadd.xlane.f32.xlu0 %v312
        %v314 = vpop.xlane.xlu0 %313
        %v315 = vsel %vm287, %v274, 0.0
        %316 = vadd.xlane.f32.xlu0 %v315
        %v317 = vpop.xlane.xlu0 %316
        %v318 = vsel %vm287, %v276, 0.0
        %319 = vadd.xlane.f32.xlu0 %v318
        %v320 = vpop.xlane.xlu0 %319
        %v321 = vsel %vm287, %v278, 0.0
        %322 = vadd.xlane.f32.xlu0 %v321
        %v323 = vpop.xlane.xlu0 %322
        %v324 = vsel %vm287, %v280, 0.0
        %325 = vadd.xlane.f32.xlu0 %v324
        %v326 = vpop.xlane.xlu0 %325
        %v327 = vsel %vm287, %v282, 0.0
        %328 = vadd.xlane.f32.xlu0 %v327
        %v329 = vpop.xlane.xlu0 %328
        %v330 = vsel %vm287, %v284, 0.0
        %331 = vadd.xlane.f32.xlu0 %v330
        %v332 = vpop.xlane.xlu0 %331
        %v333 = vsel %vm287, %v286, 0.0
        %334 = vadd.xlane.f32.xlu0 %v333
        %v335 = vpop.xlane.xlu0 %334
        %v336 = vadd.f32 %v290, %v314
        %v337 = vadd.f32 %v293, %v317
        %v338 = vadd.f32 %v296, %v320
        %v339 = vadd.f32 %v299, %v323
        %v340 = vadd.f32 %v302, %v326
        %v341 = vadd.f32 %v305, %v329
        %v342 = vadd.f32 %v308, %v332
        %v343 = vadd.f32 %v311, %v335
        %v344 = vmul.f32 %v336, 0.0078125
        %v345 = vmul.f32 %v337, 0.0078125
        %v346 = vmul.f32 %v338, 0.0078125
        %v347 = vmul.f32 %v339, 0.0078125
        %v348 = vmul.f32 %v340, 0.0078125
        %v349 = vmul.f32 %v341, 0.0078125
        %v350 = vmul.f32 %v342, 0.0078125
        %v351 = vmul.f32 %v343, 0.0078125
        %v352 = vsub.f32 %v271, %v344
        %v353 = vsub.f32 %v273, %v345
        %v354 = vsub.f32 %v275, %v346
        %v355 = vsub.f32 %v277, %v347
        %v356 = vsub.f32 %v279, %v348
        %v357 = vsub.f32 %v281, %v349
        %v358 = vsub.f32 %v283, %v350
        %v359 = vsub.f32 %v285, %v351
        %v360 = vsub.f32 %v272, %v344
        %v361 = vsub.f32 %v274, %v345
        %v362 = vsub.f32 %v276, %v346
        %v363 = vsub.f32 %v278, %v347
        %v364 = vsub.f32 %v280, %v348
        %v365 = vsub.f32 %v282, %v349
        %v366 = vsub.f32 %v284, %v350
        %v367 = vsub.f32 %v286, %v351
        %v368 = vmul.f32 %v352, %v352
        %v369 = vmul.f32 %v353, %v353
        %v370 = vmul.f32 %v354, %v354
        %v371 = vmul.f32 %v355, %v355
        %v372 = vmul.f32 %v356, %v356
        %v373 = vmul.f32 %v357, %v357
        %v374 = vmul.f32 %v358, %v358
        %v375 = vmul.f32 %v359, %v359
        %v376 = vsel %vm287, %v368, 0.0
        %377 = vadd.xlane.f32.xlu0 %v376
        %v378 = vpop.xlane.xlu0 %377
        %v379 = vsel %vm287, %v369, 0.0
        %380 = vadd.xlane.f32.xlu0 %v379
        %v381 = vpop.xlane.xlu0 %380
        %v382 = vsel %vm287, %v370, 0.0
        %383 = vadd.xlane.f32.xlu0 %v382
        %v384 = vpop.xlane.xlu0 %383
        %v385 = vsel %vm287, %v371, 0.0
        %386 = vadd.xlane.f32.xlu0 %v385
        %v387 = vpop.xlane.xlu0 %386
        %v388 = vsel %vm287, %v372, 0.0
        %389 = vadd.xlane.f32.xlu0 %v388
        %v390 = vpop.xlane.xlu0 %389
        %v391 = vsel %vm287, %v373, 0.0
        %392 = vadd.xlane.f32.xlu0 %v391
        %v393 = vpop.xlane.xlu0 %392
        %v394 = vsel %vm287, %v374, 0.0
        %395 = vadd.xlane.f32.xlu0 %v394
        %v396 = vpop.xlane.xlu0 %395
        %v397 = vsel %vm287, %v375, 0.0
        %398 = vadd.xlane.f32.xlu0 %v397
        %v399 = vpop.xlane.xlu0 %398
        %v400 = vmul.f32 %v360, %v360
        %v401 = vmul.f32 %v361, %v361
        %v402 = vmul.f32 %v362, %v362
        %v403 = vmul.f32 %v363, %v363
        %v404 = vmul.f32 %v364, %v364
        %v405 = vmul.f32 %v365, %v365
        %v406 = vmul.f32 %v366, %v366
        %v407 = vmul.f32 %v367, %v367
        %v408 = vsel %vm287, %v400, 0.0
        %409 = vadd.xlane.f32.xlu0 %v408
        %v410 = vpop.xlane.xlu0 %409
        %v411 = vsel %vm287, %v401, 0.0
        %412 = vadd.xlane.f32.xlu0 %v411
        %v413 = vpop.xlane.xlu0 %412
        %v414 = vsel %vm287, %v402, 0.0
        %415 = vadd.xlane.f32.xlu0 %v414
        %v416 = vpop.xlane.xlu0 %415
        %v417 = vsel %vm287, %v403, 0.0
        %418 = vadd.xlane.f32.xlu0 %v417
        %v419 = vpop.xlane.xlu0 %418
        %v420 = vsel %vm287, %v404, 0.0
        %421 = vadd.xlane.f32.xlu0 %v420
        %v422 = vpop.xlane.xlu0 %421
        %v423 = vsel %vm287, %v405, 0.0
        %424 = vadd.xlane.f32.xlu0 %v423
        %v425 = vpop.xlane.xlu0 %424
        %v426 = vsel %vm287, %v406, 0.0
        %427 = vadd.xlane.f32.xlu0 %v426
        %v428 = vpop.xlane.xlu0 %427
        %v429 = vsel %vm287, %v407, 0.0
        %430 = vadd.xlane.f32.xlu0 %v429
        %v431 = vpop.xlane.xlu0 %430
        %v432 = vadd.f32 %v378, %v410
        %v433 = vadd.f32 %v381, %v413
        %v434 = vadd.f32 %v384, %v416
        %v435 = vadd.f32 %v387, %v419
        %v436 = vadd.f32 %v390, %v422
        %v437 = vadd.f32 %v393, %v425
        %v438 = vadd.f32 %v396, %v428
        %v439 = vadd.f32 %v399, %v431
        %v440 = vmul.f32 %v432, 0.0078125
        %v441 = vmul.f32 %v433, 0.0078125
        %v442 = vmul.f32 %v434, 0.0078125
        %v443 = vmul.f32 %v435, 0.0078125
        %v444 = vmul.f32 %v436, 0.0078125
        %v445 = vmul.f32 %v437, 0.0078125
        %v446 = vmul.f32 %v438, 0.0078125
        %v447 = vmul.f32 %v439, 0.0078125
        %v448 = vadd.f32 %v440, 1e-05
        %v449 = vadd.f32 %v441, 1e-05
        %v450 = vadd.f32 %v442, 1e-05
        %v451 = vadd.f32 %v443, 1e-05
        %v452 = vadd.f32 %v444, 1e-05
        %v453 = vadd.f32 %v445, 1e-05
        %v454 = vadd.f32 %v446, 1e-05
        %v455 = vadd.f32 %v447, 1e-05
        %v456 = vrsqrt.pop %v448
        %v457 = vrsqrt.pop %v449
        %v458 = vrsqrt.pop %v450
        %v459 = vrsqrt.pop %v451
        %v460 = vrsqrt.pop %v452
        %v461 = vrsqrt.pop %v453
        %v462 = vrsqrt.pop %v454
        %v463 = vrsqrt.pop %v455
        %v464 = vmul.f32 %v352, %v456
        %v465 = vmul.f32 %v353, %v457
        %v466 = vmul.f32 %v354, %v458
        %v467 = vmul.f32 %v355, %v459
        %v468 = vmul.f32 %v356, %v460
        %v469 = vmul.f32 %v357, %v461
        %v470 = vmul.f32 %v358, %v462
        %v471 = vmul.f32 %v359, %v463
        %v472 = vmul.f32 %v360, %v456
        %v473 = vmul.f32 %v361, %v457
        %v474 = vmul.f32 %v362, %v458
        %v475 = vmul.f32 %v363, %v459
        %v476 = vmul.f32 %v364, %v460
        %v477 = vmul.f32 %v365, %v461
        %v478 = vmul.f32 %v366, %v462
        %v479 = vmul.f32 %v367, %v463
        %v480 = vld [vmem:[#allocation4] sm:$0xff]
        %v481 = vld [vmem:[#allocation4 + $0x8] sm:$0xff]
        %v482 = vld [vmem:[#allocation4 + $0x10] sm:$0xff]
        %v483 = vld [vmem:[#allocation4 + $0x18] sm:$0xff]
        %v484 = vld [vmem:[#allocation4 + $0x20] sm:$0xff]
        %v485 = vld [vmem:[#allocation4 + $0x28] sm:$0xff]
        %v486 = vld [vmem:[#allocation4 + $0x30] sm:$0xff]
        %v487 = vld [vmem:[#allocation4 + $0x38] sm:$0xff]
        %v488 = vld [vmem:[#allocation6] sm:$0xff]
        %v489 = vld [vmem:[#allocation6 + $0x8] sm:$0xff]
        %v490 = vld [vmem:[#allocation6 + $0x10] sm:$0xff]
        %v491 = vld [vmem:[#allocation6 + $0x18] sm:$0xff]
        %v492 = vld [vmem:[#allocation6 + $0x20] sm:$0xff]
        %v493 = vld [vmem:[#allocation6 + $0x28] sm:$0xff]
        %v494 = vld [vmem:[#allocation6 + $0x30] sm:$0xff]
        %v495 = vld [vmem:[#allocation6 + $0x38] sm:$0xff]
        %v497 = vsel %vm287, %v472, 0
        %v500 = vsel %vm287, %v473, 0
        %v503 = vsel %vm287, %v474, 0
        %v506 = vsel %vm287, %v475, 0
        %v509 = vsel %vm287, %v476, 0
        %v512 = vsel %vm287, %v477, 0
        %v515 = vsel %vm287, %v478, 0
        %v518 = vsel %vm287, %v479, 0
        %520 = vmatprep.subr.mxu0 0.0
        %521 = vmatpush1.msra.mxu0 %v488
        %522 = vmatprep.subr.mxu0 0.0
        %523 = vmatpush1.msra.mxu0 %v489
        %524 = vmatprep.subr.mxu0 0.0
        %525 = vmatpush1.msra.mxu0 %v490
        %526 = vmatprep.subr.mxu0 0.0
        %527 = vmatpush1.msra.mxu0 %v491
        %528 = vmatprep.subr.mxu0 0.0
        %529 = vmatpush1.msra.mxu0 %v492
        %530 = vmatprep.subr.mxu0 0.0
        %531 = vmatpush1.msra.mxu0 %v493
        %532 = vmatprep.subr.mxu0 0.0
        %533 = vmatpush1.msra.mxu0 %v494
        %534 = vmatprep.subr.mxu0 0.0
        %535 = vmatpush1.msra.mxu0 %v495
        %536 = vmatprep.subr.mxu0 0.0
        %537 = vmatpush1.msra.mxu0 0.0
        %538 = vmatprep.subr.mxu0 0.0
        %539 = vmatpush1.msra.mxu0 0.0
        %540 = vmatprep.subr.mxu0 0.0
        %541 = vmatpush1.msra.mxu0 0.0
        %542 = vmatprep.subr.mxu0 0.0
        %543 = vmatpush1.msra.mxu0 0.0
        %544 = vmatprep.subr.mxu0 0.0
        %545 = vmatpush1.msra.mxu0 0.0
        %546 = vmatprep.subr.mxu0 0.0
        %547 = vmatpush1.msra.mxu0 0.0
        %548 = vmatprep.subr.mxu0 0.0
        %549 = vmatpush1.msra.mxu0 0.0
        %550 = vmatprep.subr.mxu0 0.0
        %551 = vmatpush1.msra.mxu0 0.0
        %552 = vmatprep.subr.mxu0 0.0
        %553 = vmatpush1.msra.mxu0 0.0
        %554 = vmatprep.subr.mxu0 0.0
        %555 = vmatpush1.msra.mxu0 0.0
        %556 = vmatprep.subr.mxu0 0.0
        %557 = vmatpush1.msra.mxu0 0.0
        %558 = vmatprep.subr.mxu0 0.0
        %559 = vmatpush1.msra.mxu0 0.0
        %560 = vmatprep.subr.mxu0 0.0
        %561 = vmatpush1.msra.mxu0 0.0
        %562 = vmatprep.subr.mxu0 0.0
        %563 = vmatpush1.msra.mxu0 0.0
        %564 = vmatprep.subr.mxu0 0.0
        %565 = vmatpush1.msra.mxu0 0.0
        %566 = vmatprep.subr.mxu0 0.0
        %567 = vmatpush1.msra.mxu0 0.0
        %568 = vmatprep.subr.mxu0 0.0
        %569 = vmatpush1.msra.mxu0 0.0
        %570 = vmatprep.subr.mxu0 0.0
        %571 = vmatpush1.msra.mxu0 0.0
        %572 = vmatprep.subr.mxu0 0.0
        %573 = vmatpush1.msra.mxu0 0.0
        %574 = vmatprep.subr.mxu0 0.0
        %575 = vmatpush1.msra.mxu0 0.0
        %576 = vmatprep.subr.mxu0 0.0
        %577 = vmatpush1.msra.mxu0 0.0
        %578 = vmatprep.subr.mxu0 0.0
        %579 = vmatpush1.msra.mxu0 0.0
        %580 = vmatprep.subr.mxu0 0.0
        %581 = vmatpush1.msra.mxu0 0.0
        %582 = vmatprep.subr.mxu0 0.0
        %583 = vmatpush1.msra.mxu0 0.0
        %584 = vmatprep.mubr.f32.mxu0 0.0
        %585 = vmatmul.mubr.f32.gmra.mrb[0].mxu0 %v497
        %v586 = vpop.f32.mrb[0].mxu0
        %v587 = vadd.f32 0.0, %v586
        %v588 = vpop.f32.mrb[0].mxu0
        %589 = vmatprep.mubr.f32.mxu0 0.0
        %590 = vmatmul.mubr.f32.gmra.mrb[0].mxu0 %v500
        %v591 = vpop.f32.mrb[0].mxu0
        %v592 = vadd.f32 0.0, %v591
        %v593 = vpop.f32.mrb[0].mxu0
        %594 = vmatprep.mubr.f32.mxu0 0.0
        %595 = vmatmul.mubr.f32.gmra.mrb[0].mxu0 %v503
        %v596 = vpop.f32.mrb[0].mxu0
        %v597 = vadd.f32 0.0, %v596
        %v598 = vpop.f32.mrb[0].mxu0
        %599 = vmatprep.mubr.f32.mxu0 0.0
        %600 = vmatmul.mubr.f32.gmra.mrb[0].mxu0 %v506
        %v601 = vpop.f32.mrb[0].mxu0
        %v602 = vadd.f32 0.0, %v601
        %v603 = vpop.f32.mrb[0].mxu0
        %604 = vmatprep.mubr.f32.mxu0 0.0
        %605 = vmatmul.mubr.f32.gmra.mrb[0].mxu0 %v509
        %v606 = vpop.f32.mrb[0].mxu0
        %v607 = vadd.f32 0.0, %v606
        %v608 = vpop.f32.mrb[0].mxu0
        %609 = vmatprep.mubr.f32.mxu0 0.0
        %610 = vmatmul.mubr.f32.gmra.mrb[0].mxu0 %v512
        %v611 = vpop.f32.mrb[0].mxu0
        %v612 = vadd.f32 0.0, %v611
        %v613 = vpop.f32.mrb[0].mxu0
        %614 = vmatprep.mubr.f32.mxu0 0.0
        %615 = vmatmul.mubr.f32.gmra.mrb[0].mxu0 %v515
        %v616 = vpop.f32.mrb[0].mxu0
        %v617 = vadd.f32 0.0, %v616
        %v618 = vpop.f32.mrb[0].mxu0
        %619 = vmatprep.mubr.f32.mxu0 0.0
        %620 = vmatmul.mubr.f32.gmra.mrb[0].mxu0 %v518
        %v621 = vpop.f32.mrb[0].mxu0
        %v622 = vadd.f32 0.0, %v621
        %v623 = vpop.f32.mrb[0].mxu0
        %624 = vdwg.mxu0
        %v626 = vsel %vm287, %v464, 0
        %v629 = vsel %vm287, %v465, 0
        %v632 = vsel %vm287, %v466, 0
        %v635 = vsel %vm287, %v467, 0
        %v638 = vsel %vm287, %v468, 0
        %v641 = vsel %vm287, %v469, 0
        %v644 = vsel %vm287, %v470, 0
        %v647 = vsel %vm287, %v471, 0
        %649 = vmatprep.subr.mxu0 0.0
        %650 = vmatpush1.msra.mxu0 %v480
        %651 = vmatprep.subr.mxu0 0.0
        %652 = vmatpush1.msra.mxu0 %v481
        %653 = vmatprep.subr.mxu0 0.0
        %654 = vmatpush1.msra.mxu0 %v482
        %655 = vmatprep.subr.mxu0 0.0
        %656 = vmatpush1.msra.mxu0 %v483
        %657 = vmatprep.subr.mxu0 0.0
        %658 = vmatpush1.msra.mxu0 %v484
        %659 = vmatprep.subr.mxu0 0.0
        %660 = vmatpush1.msra.mxu0 %v485
        %661 = vmatprep.subr.mxu0 0.0
        %662 = vmatpush1.msra.mxu0 %v486
        %663 = vmatprep.subr.mxu0 0.0
        %664 = vmatpush1.msra.mxu0 %v487
        %665 = vmatprep.subr.mxu0 0.0
        %666 = vmatpush1.msra.mxu0 0.0
        %667 = vmatprep.subr.mxu0 0.0
        %668 = vmatpush1.msra.mxu0 0.0
        %669 = vmatprep.subr.mxu0 0.0
        %670 = vmatpush1.msra.mxu0 0.0
        %671 = vmatprep.subr.mxu0 0.0
        %672 = vmatpush1.msra.mxu0 0.0
        %673 = vmatprep.subr.mxu0 0.0
        %674 = vmatpush1.msra.mxu0 0.0
        %675 = vmatprep.subr.mxu0 0.0
        %676 = vmatpush1.msra.mxu0 0.0
        %677 = vmatprep.subr.mxu0 0.0
        %678 = vmatpush1.msra.mxu0 0.0
        %679 = vmatprep.subr.mxu0 0.0
        %680 = vmatpush1.msra.mxu0 0.0
        %681 = vmatprep.subr.mxu0 0.0
        %682 = vmatpush1.msra.mxu0 0.0
        %683 = vmatprep.subr.mxu0 0.0
        %684 = vmatpush1.msra.mxu0 0.0
        %685 = vmatprep.subr.mxu0 0.0
        %686 = vmatpush1.msra.mxu0 0.0
        %687 = vmatprep.subr.mxu0 0.0
        %688 = vmatpush1.msra.mxu0 0.0
        %689 = vmatprep.subr.mxu0 0.0
        %690 = vmatpush1.msra.mxu0 0.0
        %691 = vmatprep.subr.mxu0 0.0
        %692 = vmatpush1.msra.mxu0 0.0
        %693 = vmatprep.subr.mxu0 0.0
        %694 = vmatpush1.msra.mxu0 0.0
        %695 = vmatprep.subr.mxu0 0.0
        %696 = vmatpush1.msra.mxu0 0.0
        %697 = vmatprep.subr.mxu0 0.0
        %698 = vmatpush1.msra.mxu0 0.0
        %699 = vmatprep.subr.mxu0 0.0
        %700 = vmatpush1.msra.mxu0 0.0
        %701 = vmatprep.subr.mxu0 0.0
        %702 = vmatpush1.msra.mxu0 0.0
        %703 = vmatprep.subr.mxu0 0.0
        %704 = vmatpush1.msra.mxu0 0.0
        %705 = vmatprep.subr.mxu0 0.0
        %706 = vmatpush1.msra.mxu0 0.0
        %707 = vmatprep.subr.mxu0 0.0
        %708 = vmatpush1.msra.mxu0 0.0
        %709 = vmatprep.subr.mxu0 0.0
        %710 = vmatpush1.msra.mxu0 0.0
        %711 = vmatprep.subr.mxu0 0.0
        %712 = vmatpush1.msra.mxu0 0.0
        %713 = vmatprep.mubr.f32.mxu0 0.0
        %714 = vmatmul.mubr.f32.gmra.mrb[0].mxu0 %v626
        %v715 = vpop.f32.mrb[0].mxu0
        %v716 = vadd.f32 %v587, %v715
        %v717 = vpop.f32.mrb[0].mxu0
        %718 = vmatprep.mubr.f32.mxu0 0.0
        %719 = vmatmul.mubr.f32.gmra.mrb[0].mxu0 %v629
        %v720 = vpop.f32.mrb[0].mxu0
        %v721 = vadd.f32 %v592, %v720
        %v722 = vpop.f32.mrb[0].mxu0
        %723 = vmatprep.mubr.f32.mxu0 0.0
        %724 = vmatmul.mubr.f32.gmra.mrb[0].mxu0 %v632
        %v725 = vpop.f32.mrb[0].mxu0
        %v726 = vadd.f32 %v597, %v725
        %v727 = vpop.f32.mrb[0].mxu0
        %728 = vmatprep.mubr.f32.mxu0 0.0
        %729 = vmatmul.mubr.f32.gmra.mrb[0].mxu0 %v635
        %v730 = vpop.f32.mrb[0].mxu0
        %v731 = vadd.f32 %v602, %v730
        %v732 = vpop.f32.mrb[0].mxu0
        %733 = vmatprep.mubr.f32.mxu0 0.0
        %734 = vmatmul.mubr.f32.gmra.mrb[0].mxu0 %v638
        %v735 = vpop.f32.mrb[0].mxu0
        %v736 = vadd.f32 %v607, %v735
        %v737 = vpop.f32.mrb[0].mxu0
        %738 = vmatprep.mubr.f32.mxu0 0.0
        %739 = vmatmul.mubr.f32.gmra.mrb[0].mxu0 %v641
        %v740 = vpop.f32.mrb[0].mxu0
        %v741 = vadd.f32 %v612, %v740
        %v742 = vpop.f32.mrb[0].mxu0
        %743 = vmatprep.mubr.f32.mxu0 0.0
        %744 = vmatmul.mubr.f32.gmra.mrb[0].mxu0 %v644
        %v745 = vpop.f32.mrb[0].mxu0
        %v746 = vadd.f32 %v617, %v745
        %v747 = vpop.f32.mrb[0].mxu0
        %748 = vmatprep.mubr.f32.mxu0 0.0
        %749 = vmatmul.mubr.f32.gmra.mrb[0].mxu0 %v647
        %v750 = vpop.f32.mrb[0].mxu0
        %v751 = vadd.f32 %v622, %v750
        %v752 = vpop.f32.mrb[0].mxu0
        %753 = vdwg.mxu0
        %v754 = vld [vmem:[%s3] sm:$0x1]
        %v756 = vlaneseq
        %v757 = vshrl.u32 %v756, 7
        %v758 = vsub.s32 0, %v757
        %v759 = vrot.slane %v754, %v758
        %v761 = vadd.f32 %v716, %v759
        %v762 = vadd.f32 %v721, %v759
        %v763 = vadd.f32 %v726, %v759
        %v764 = vadd.f32 %v731, %v759
        %v765 = vadd.f32 %v736, %v759
        %v766 = vadd.f32 %v741, %v759
        %v767 = vadd.f32 %v746, %v759
        %v768 = vadd.f32 %v751, %v759
        %769 = vst.msk [vmem:[%s268] sm:$0xff] %vm287, %v761
        %770 = vst.msk [vmem:[%s268 + $0x8] sm:$0xff] %vm287, %v762
        %771 = vst.msk [vmem:[%s268 + $0x10] sm:$0xff] %vm287, %v763
        %772 = vst.msk [vmem:[%s268 + $0x18] sm:$0xff] %vm287, %v764
        %773 = vst.msk [vmem:[%s268 + $0x20] sm:$0xff] %vm287, %v765
        %774 = vst.msk [vmem:[%s268 + $0x28] sm:$0xff] %vm287, %v766
        %775 = vst.msk [vmem:[%s268 + $0x30] sm:$0xff] %vm287, %v767
        %776 = vst.msk [vmem:[%s268 + $0x38] sm:$0xff] %vm287, %v768
        %s777 = sadd.s32 %s23, %s24
        %s778 = smul.u32 8, %s777
        %p779 = scmp.lt.s32.totalorder %s778, 15
        %s780 = scalar_select %p779, %s778, 15
        %s781 = smul.addr %s780, 8
        %s782 = scalar_lea.vmem %s4, %s781
        // Predicated region
        $region49: #{tpu_custom_call.1} parent=35 // pred_check
          %p783 = pneg %p142
        $region50: #{tpu_custom_call.1} parent=35 // pred_check_branch
          %785 = sbr.rel (%p783) target = $region52
        $region51: #{tpu_custom_call.1} parent=35 // pred_region
          %s786 = sadd.s32 %s23, %s24
          %s787 = smul.u32 8, %s786
        $region52: #{tpu_custom_call.1} parent=35 // pred_fallthru
          _
      $region36: #{tpu_custom_call.1} parent=5 // pred_fallthru
        _
      %p788 = scmp.le.s32.totalorder 2, %s14
      // Predicated region
      $region53: #{tpu_custom_call.1} parent=5 // pred_check
        %p789 = pneg %p788
      $region54: #{tpu_custom_call.1} parent=5 // pred_check_branch
        %791 = sbr.rel (%p789) target = $region56
      $region55: #{tpu_custom_call.1} parent=5 // pred_region
        %s792 = ssub.s32 %s14, 2
        // Predicated region
        $region57: #{tpu_custom_call.1} parent=55 // pred_check
          %p793 = pneg %p148
        $region58: #{tpu_custom_call.1} parent=55 // pred_check_branch
          %795 = sbr.rel (%p793) target = $region60
        $region59: #{tpu_custom_call.1} parent=55 // pred_region
          %s796 = sadd.s32 %s25, %s26
          %s797 = smul.u32 8, %s796
          %p798 = scmp.lt.s32.totalorder %s797, 15
          %s799 = scalar_select %p798, %s797, 15
          %s800 = smul.addr %s799, 8
          %s801 = scalar_lea.vmem %s4, %s800
        $region60: #{tpu_custom_call.1} parent=55 // pred_fallthru
          _
      $region56: #{tpu_custom_call.1} parent=5 // pred_fallthru
        _
    $region6: #{tpu_custom_call.1} parent=1 // loop_footer
      %s18 = sadd.s32 1, %s14
    $region7: #{tpu_custom_call.1} parent=1 // loop_footer_branch
      %13 = sbr.rel target = $region3
    $region8: #{tpu_custom_call.1} parent=1 // loop_exit
      _
    %802 = vsyncpa [#allocation3], 1
    %s803 = scalar_lea.sflag [#allocation3], 1
    %804 = vsyncpa %s803, 1
    %805 = vsyncpa [#allocation5], 1

</llo_original>
